<compile_context>
chip_gen: v7x
topology: tpu7x:2x2x1
jax: 0.10.0
libtpu: 0.0.40
codegen_flags: <defaults>
</compile_context>

<pallas_src>
import jax
import jax.numpy as jnp
from jax.experimental import pallas as pl
from jax.experimental.pallas import tpu as pltpu

_TILE_BYTES = 2 * 1024 * 1024      # ~2 MiB per tile (8 MiB live, fits v5e scoped VMEM)
_MIN_SPLIT_BYTES = 512 * 1024      # above this, force >=2 grid steps (v7x has 2 TCs)


def _dm_kernel(x_ref, o_ref):
    # x / 0.5 - 1  ==  2*x - 1  (exact: 0.5 is a power of two)
    o_ref[...] = x_ref[...] * 2.0 - 1.0


def _round_up(a, b):
    return pl.cdiv(a, b) * b


def dm_forward(x, *, donate_input=False):
    """Apply Dm.forward (x/0.5 - 1) to an arbitrary-shape tensor via Pallas."""
    orig_shape = x.shape

    # PyTorch promotes integer inputs to float for x / 0.5.
    if not jnp.issubdtype(x.dtype, jnp.floating):
        x = x.astype(jnp.float32)
    dtype = x.dtype
    itemsize = jnp.dtype(dtype).itemsize
    sub = max(8, 32 // itemsize)          # sublane multiple: 8 f32 / 16 bf16 / 32 int8

    total = x.size
    flat = x.reshape(-1)                  # free (bitcast) for contiguous arrays

    # Pick the widest lane width (multiple of 128) that divides the size so the
    # common case needs no padding at all.
    lane = None
    for cand in (512, 256, 128):
        if total % cand == 0:
            lane = cand
            break

    padded_total = total
    if lane is None:
        # Ragged tail: pad by <= 127 elements to the next multiple of 128.
        lane = 128
        padded_total = _round_up(total, lane)
        flat = jnp.pad(flat, (0, padded_total - total))

    rows = padded_total // lane
    x2d = flat.reshape(rows, lane)        # free: same contiguous buffer

    nbytes = padded_total * itemsize
    # Target ~2 MiB tiles, rounded down to the sublane multiple.
    target_rows = max(sub, (_TILE_BYTES // (lane * itemsize)) // sub * sub)
    if nbytes <= _MIN_SPLIT_BYTES or rows <= sub:
        block_rows = rows                 # block == full array dims -> always valid
    else:
        # At least 2 grid steps so both v7x TensorCores get work; block_rows is
        # a multiple of `sub`, so partial last blocks are handled (masked) by Pallas.
        block_rows = min(target_rows, _round_up(pl.cdiv(rows, 2), sub))
    grid = (pl.cdiv(rows, block_rows),)

    aliases = {}
    if donate_input and padded_total == total:
        aliases = {0: 0}                  # donate x: halves peak HBM footprint

    out2d = pl.pallas_call(
        _dm_kernel,
        out_shape=jax.ShapeDtypeStruct((rows, lane), dtype),
        grid=grid,
        in_specs=[pl.BlockSpec((block_rows, lane), lambda i: (i, 0))],
        out_specs=pl.BlockSpec((block_rows, lane), lambda i: (i, 0)),
        compiler_params=pltpu.CompilerParams(
            dimension_semantics=("parallel",),
        ),
        input_output_aliases=aliases,
    )(x2d)

    out_flat = out2d.reshape(-1)
    if padded_total != total:
        out_flat = out_flat[:total]
    return out_flat.reshape(orig_shape)


if __name__ == "__main__":
    key = jax.random.PRNGKey(0)
    k1, k2, k3 = jax.random.split(key, 3)

    # (a) Small NCHW input consistent with the module (image normalization):
    #     single full block, grid=(1,).
    x = jax.random.uniform(k1, (2, 4, 16, 16), dtype=jnp.float32)
    out = dm_forward(x)
    jax.block_until_ready(out)
    ref = x / 0.5 - 1.0
    assert out.shape == x.shape and out.dtype == x.dtype
    assert jnp.allclose(out, ref, atol=1e-6), "mismatch vs reference (small)"

    # (b) CIFAR-like batch: zero-copy lane-dense path with >= 2 grid steps
    #     (exercises tiling / megacore split).
    x2 = jax.random.uniform(k2, (64, 3, 32, 32), dtype=jnp.float32)
    out2 = dm_forward(x2)
    jax.block_until_ready(out2)
    ref2 = x2 / 0.5 - 1.0
    assert out2.shape == x2.shape and out2.dtype == x2.dtype
    assert jnp.allclose(out2, ref2, atol=1e-6), "mismatch vs reference (tiled)"

    # (c) Ragged total (not a multiple of 128): minimal-pad tail path.
    x3 = jax.random.uniform(k3, (2, 3, 129, 129), dtype=jnp.float32)
    out3 = dm_forward(x3)
    jax.block_until_ready(out3)
    ref3 = x3 / 0.5 - 1.0
    assert out3.shape == x3.shape and out3.dtype == x3.dtype
    assert jnp.allclose(out3, ref3, atol=1e-6), "mismatch vs reference (ragged)"

    print("KERNEL_OK")
</pallas_src>

<mosaic_0001>
module attributes {stable_mosaic.version = 11 : i64} {
  func.func @_dm_kernel(%arg0: i32, %arg1: memref<4x512xf32, #tpu.memory_space<vmem>>, %arg2: memref<4x512xf32, #tpu.memory_space<vmem>>) attributes {dimension_semantics = [#tpu.dimension_semantics<parallel>], iteration_bounds = array<i64: 1>, scalar_prefetch = 0 : i64, scratch_operands = 0 : i64, tpu.core_type = #tpu.core_type<tc>, window_params = [{transform_indices = @transform_0, window_bounds = array<i64: 4, 512>}, {transform_indices = @transform_1, window_bounds = array<i64: 4, 512>}]} {
    %c0 = arith.constant 0 : index
    %c0_0 = arith.constant 0 : index
    %0 = vector.load %arg1[%c0, %c0_0] : memref<4x512xf32, #tpu.memory_space<vmem>>, vector<4x512xf32>
    %cst = arith.constant 2.000000e+00 : f32
    %1 = vector.broadcast %cst : f32 to vector<4x512xf32>
    %2 = arith.mulf %0, %1 : vector<4x512xf32>
    %cst_1 = arith.constant 1.000000e+00 : f32
    %3 = vector.broadcast %cst_1 : f32 to vector<4x512xf32>
    %4 = arith.subf %2, %3 : vector<4x512xf32>
    %c0_2 = arith.constant 0 : index
    %c0_3 = arith.constant 0 : index
    %5 = vector.load %arg2[%c0_2, %c0_3] : memref<4x512xf32, #tpu.memory_space<vmem>>, vector<4x512xf32>
    tpu.vector_store %arg2[%c0_2, %c0_3], %4 {strides = array<i32>} : memref<4x512xf32, #tpu.memory_space<vmem>>, vector<4x512xf32>,
    return
  }
  func.func @transform_0(%arg0: i32) -> (i32, i32) {
    %c0_i32 = arith.constant 0 : i32
    %c0_i32_0 = arith.constant 0 : i32
    return %arg0, %c0_i32 : i32, i32
  }
  func.func @transform_1(%arg0: i32) -> (i32, i32) {
    %c0_i32 = arith.constant 0 : i32
    %c0_i32_0 = arith.constant 0 : i32
    return %arg0, %c0_i32 : i32, i32
  }
}

</mosaic_0001>

<llo_original>
// kernel: tpu_custom_call.1
$region0: #{tpu_custom_call.1}
  #allocation0 [shape = 'u32[]', space=smem, size = 0x4, offset = 0x4, fixed_abs, tag = 'smem constant byte address 0x4 - core index']
  #allocation1 [shape = 'u32[144,128]{1,0:T(1,128)}', space=vmem, size = 0x12000, scoped, tag = 'internal scratch']
  %s0 = inlined_call_operand.hbm [shape: f32[4,512], index: 0, kind: input, shape index: {}]
  %s1 = inlined_call_operand.hbm [shape: f32[4,512], index: 1, kind: output, shape index: {}]
  %s2 = sld [smem:[#allocation0]]
  $region18: #{tpu_custom_call.1} parent=0
    _
  %s4 = ssub.s32 1, %s2
  %s5 = scalar_select 0, %s4, %s2
  $region1: #{tpu_custom_call.1} parent=0
    #allocation2 [shape = 'u8[8192]{0}', space=vmem, size = 0x2000, scoped, tag = 'input window, operand 0, single buffered']
    #allocation3 [shape = 's32[1]{0}', space=sflag, size = 0x4, scoped, tag = 'scoped memory for tpu_custom_call.1']
    #allocation4 [shape = 's32[1]{0}', space=sflag, size = 0x4, scoped, tag = 'scoped memory for tpu_custom_call.1']
    #allocation5 [shape = 'u8[8192]{0}', space=vmem, size = 0x2000, scoped, tag = 'output window, operand 0, single buffered']
    %6 = vsyncpa [#allocation3], 0
    %7 = vsyncpa [#allocation4], 0
    // Predicated region
    $region2: #{tpu_custom_call.1} parent=1 // pred_check
      _
    $region3: #{tpu_custom_call.1} parent=1 // pred_check_branch
      %9 = sbr.rel (0) target = $region5
    $region4: #{tpu_custom_call.1} parent=1 // pred_region
      %s11 = ssub.s32 256, 256
      %12 = vsyncadd [#allocation3], %s11
      %s14 = sshll.u32 [#allocation2], 4
      %s15 = int_to_ptr.vmem [resolvable:$true] %s14
      %17 = dma.hbm_to_vmem [thread:$0]  %s0, 256, %s15, [#allocation3]
    $region5: #{tpu_custom_call.1} parent=1 // pred_fallthru
      _
    // Predicated region
    $region6: #{tpu_custom_call.1} parent=1 // pred_check
      _
    $region7: #{tpu_custom_call.1} parent=1 // pred_check_branch
      %19 = sbr.rel (0) target = $region9
    $region8: #{tpu_custom_call.1} parent=1 // pred_region
      %20 = dma.done [#allocation3], 256
    $region9: #{tpu_custom_call.1} parent=1 // pred_fallthru
      _
    %v21 = vld [vmem:[#allocation2] sm:$0xff]
    %v22 = vld [vmem:[#allocation2 + $0x8] sm:$0xff]
    %v23 = vmul.f32 %v21, 2.0
    %v24 = vmul.f32 %v22, 2.0
    %v25 = vsub.f32 %v23, 1.0
    %v26 = vsub.f32 %v24, 1.0
    %27 = vst [vmem:[#allocation5] sm:$0xff] %v25
    %28 = vst [vmem:[#allocation5 + $0x8] sm:$0xff] %v26
    // Predicated region
    $region10: #{tpu_custom_call.1} parent=1 // pred_check
      _
    $region11: #{tpu_custom_call.1} parent=1 // pred_check_branch
      %30 = sbr.rel (0) target = $region13
    $region12: #{tpu_custom_call.1} parent=1 // pred_region
      %s32 = ssub.s32 256, 256
      %33 = vsyncadd [#allocation4], %s32
      %s35 = sshll.u32 [#allocation5], 4
      %s36 = int_to_ptr.vmem [resolvable:$true] %s35
      %38 = dma.vmem_to_hbm [thread:$0]  %s36, 256, %s1, [#allocation4]
    $region13: #{tpu_custom_call.1} parent=1 // pred_fallthru
      _
    // Predicated region
    $region14: #{tpu_custom_call.1} parent=1 // pred_check
      _
    $region15: #{tpu_custom_call.1} parent=1 // pred_check_branch
      %40 = sbr.rel (0) target = $region17
    $region16: #{tpu_custom_call.1} parent=1 // pred_region
      %41 = dma.done [#allocation4], 256
    $region17: #{tpu_custom_call.1} parent=1 // pred_fallthru
      _
    %42 = vsyncpa [#allocation3], 1
    %43 = vsyncpa [#allocation4], 1

</llo_original>
